<compile_context>
chip_gen: v7x
topology: tpu7x:2x2x1
jax: 0.10.0
libtpu: 0.0.40
codegen_flags: <defaults>
</compile_context>

<pallas_src>
import functools

import jax
import jax.numpy as jnp
from jax.experimental import pallas as pl
from jax.experimental.pallas import tpu as pltpu


# --------------------------------------------------------------------------- #
# Chip-aware sizing helpers
# --------------------------------------------------------------------------- #
_HEADROOM = 1 * 1024 * 1024            # slack for compiler-internal scratch


def _round_up(x, m):
    return ((x + m - 1) // m) * m


def _vmem_budget_bytes():
    """~60% of physical VMEM; conservative (v7x = 64 MiB) if the query fails."""
    try:
        cap = int(pltpu.get_tpu_info().vmem_capacity_bytes)
    except Exception:
        cap = 64 * 1024 * 1024
    return int(0.6 * cap)


def _pick_tile(dim, unit, max_elems):
    """Largest multiple of `unit` dividing `dim` and <= max_elems.

    `dim` is always a multiple of `unit` here, so at least `unit` is returned
    and no block ever needs padding/masking.
    """
    best = unit
    t = unit
    limit = min(dim, max_elems)
    while t <= limit:
        if dim % t == 0:
            best = t
        t += unit
    return best


# --------------------------------------------------------------------------- #
# Kernels
# --------------------------------------------------------------------------- #
def _fused_kernel(x_ref, w1t_ref, b1_ref, w2t_ref, b2_ref, o_ref, *, inv_hw):
    """Pool -> linear1 -> ReLU -> linear2 -> sigmoid -> scale, one VMEM slab.

    x_ref:  (nb, C, HW) resident slab (read once from HBM).
    w1t:    (C, Ck), b1: (1, Ck), w2t: (Ck, C), b2: (1, C)  -- resident weights.
    o_ref:  (nb, C, HW) output slab (written once to HBM).
    """
    x = x_ref[...]
    pooled = jnp.sum(x.astype(jnp.float32), axis=-1) * inv_hw         # (nb, C)
    h = jnp.dot(pooled, w1t_ref[...],
                preferred_element_type=jnp.float32) + b1_ref[...]
    h = jnp.maximum(h, 0.0)                                           # ReLU
    z = jnp.dot(h, w2t_ref[...],
                preferred_element_type=jnp.float32) + b2_ref[...]
    s = 1.0 / (1.0 + jnp.exp(-z))                                     # sigmoid
    o_ref[...] = (x * s[:, :, None]).astype(o_ref.dtype)


def _pool_kernel(x_ref, sum_ref):
    """Accumulate per-row spatial sums across HW tiles (reduction axis 1)."""
    @pl.when(pl.program_id(1) == 0)
    def _init():
        sum_ref[...] = jnp.zeros_like(sum_ref)

    sum_ref[...] += jnp.sum(x_ref[...].astype(jnp.float32), axis=-1,
                            keepdims=True)


def _scale_kernel(x_ref, s_ref, o_ref):
    """o = x * s, per-row scale broadcast over the spatial (lane) axis."""
    o_ref[...] = (x_ref[...] * s_ref[...]).astype(o_ref.dtype)


# --------------------------------------------------------------------------- #
# Forward pass
# --------------------------------------------------------------------------- #
@functools.partial(
    jax.jit,
    static_argnames=("target_block_bytes", "out_dtype", "force_two_pass"))
def self_attention(x_nchw, w1, b1, w2, b2, *,
                   target_block_bytes=4 * 1024 * 1024,
                   out_dtype=None,
                   force_two_pass=False):
    """SelfAttention.forward (SE block) for NCHW input via Pallas TPU kernels.

    Args:
      x_nchw: (N, C, H, W)
      w1: (C//k, C) linear1 weight (PyTorch out x in layout); b1: (C//k,)
      w2: (C, C//k) linear2 weight;                           b2: (C,)
      out_dtype: optional output dtype (e.g. jnp.bfloat16 to halve store
        traffic); default keeps the input dtype / f32 reference numerics.
    Returns:
      (N, C, H, W) == x * sigmoid(linear2(relu(linear1(mean_hw(x)))))
    """
    N, C, H, W = x_nchw.shape
    HW = H * W
    NC = N * C
    Ck = w1.shape[0]
    x_dtype = jnp.dtype(x_nchw.dtype)
    o_dtype = jnp.dtype(out_dtype) if out_dtype is not None else x_dtype
    el = x_dtype.itemsize

    budget = _vmem_budget_bytes()

    # VMEM bytes of one (1, C, HW) in/out slab pair (double-buffered in + out),
    # accounting for (8,128) layout padding, plus the resident weight blocks.
    per_sample = _round_up(C, 8) * _round_up(HW, 128) * el
    wbytes = 2 * 4 * (_round_up(C, 8) * _round_up(Ck, 128)
                      + _round_up(Ck, 8) * _round_up(C, 128)
                      + 8 * _round_up(Ck, 128)
                      + 8 * _round_up(C, 128))
    fused_ok = (not force_two_pass) and (
        4 * per_sample + wbytes + _HEADROOM <= budget)

    if fused_ok:
        # ---- fused single pass: 1 HBM read + 1 HBM write of x ------------- #
        nb_cap = min(max(1, target_block_bytes // per_sample),
                     max(1, (budget - wbytes - _HEADROOM) // (4 * per_sample)))
        if N >= 2:                 # keep >=2 blocks for v7x's two TensorCores
            nb_cap = min(nb_cap, N // 2)
        nb_cap = max(1, nb_cap)
        nb = 1
        for d in range(1, min(N, nb_cap) + 1):
            if N % d == 0:
                nb = d

        x3d = x_nchw.reshape(N, C, HW)
        kern = functools.partial(_fused_kernel, inv_hw=1.0 / HW)
        out = pl.pallas_call(
            kern,
            out_shape=jax.ShapeDtypeStruct((N, C, HW), o_dtype),
            grid_spec=pltpu.PrefetchScalarGridSpec(
                num_scalar_prefetch=0,
                grid=(N // nb,),
                in_specs=[
                    pl.BlockSpec((nb, C, HW), lambda i: (i, 0, 0)),
                    pl.BlockSpec((C, Ck), lambda i: (0, 0)),   # w1.T resident
                    pl.BlockSpec((1, Ck), lambda i: (0, 0)),   # b1
                    pl.BlockSpec((Ck, C), lambda i: (0, 0)),   # w2.T resident
                    pl.BlockSpec((1, C), lambda i: (0, 0)),    # b2
                ],
                out_specs=pl.BlockSpec((nb, C, HW), lambda i: (i, 0, 0)),
            ),
            compiler_params=pltpu.CompilerParams(
                dimension_semantics=("parallel",),
                vmem_limit_bytes=budget,
            ),
        )(x3d, w1.T, b1.reshape(1, Ck), w2.T, b2.reshape(1, C))
        return out.reshape(N, C, H, W)

    # ---- fallback: two streaming passes over the (N*C, H*W) slab ---------- #
    x2d = x_nchw.reshape(NC, HW)
    NCp, HWp = _round_up(NC, 8), _round_up(HW, 128)
    if (NCp, HWp) != (NC, HW):
        # Zero-padding keeps every block (8,128)-aligned (no masked stores, no
        # full-extent VMEM blowups) and leaves the pooled sums exact.
        x2d = jnp.pad(x2d, ((0, NCp - NC), (0, HWp - HW)))

    blk_budget = max(8 * 128 * el, min(target_block_bytes,
                                       (budget - _HEADROOM) // 4))
    tw = _pick_tile(HWp, 128, max(128, blk_budget // (8 * el)))
    rb_cap = max(8, blk_budget // (tw * el))
    if NCp >= 16:                  # >=2 row blocks for v7x's two TensorCores
        rb_cap = min(rb_cap, NCp // 2)
    rb = _pick_tile(NCp, 8, rb_cap)
    grid = (NCp // rb, HWp // tw)

    # pass 1: global average pooling as a tiled sum-reduction (HW axis is the
    # innermost "arbitrary" axis; resident (rb, 1) accumulator block).
    sums = pl.pallas_call(
        _pool_kernel,
        out_shape=jax.ShapeDtypeStruct((NCp, 1), jnp.float32),
        grid_spec=pltpu.PrefetchScalarGridSpec(
            num_scalar_prefetch=0,
            grid=grid,
            in_specs=[pl.BlockSpec((rb, tw), lambda i, j: (i, j))],
            out_specs=pl.BlockSpec((rb, 1), lambda i, j: (i, 0)),
        ),
        compiler_params=pltpu.CompilerParams(
            dimension_semantics=("parallel", "arbitrary"),
            vmem_limit_bytes=budget,
        ),
    )(x2d)

    # tiny SE MLP in plain XLA (one batched dense op, outside the mem-bound loop)
    pooled = sums[:NC].reshape(N, C) * (1.0 / HW)      # exact mean (true HW)
    h = jnp.maximum(pooled @ w1.T + b1, 0.0)           # (N, C//k), ReLU
    s = jax.nn.sigmoid(h @ w2.T + b2)                  # (N, C)
    s2d = s.reshape(NC, 1).astype(x2d.dtype)
    if NCp != NC:
        s2d = jnp.pad(s2d, ((0, NCp - NC), (0, 0)))

    # pass 2: channel-wise scaling (both grid axes parallel -> megacore-shardable)
    out2d = pl.pallas_call(
        _scale_kernel,
        out_shape=jax.ShapeDtypeStruct((NCp, HWp), o_dtype),
        grid_spec=pltpu.PrefetchScalarGridSpec(
            num_scalar_prefetch=0,
            grid=grid,
            in_specs=[pl.BlockSpec((rb, tw), lambda i, j: (i, j)),
                      pl.BlockSpec((rb, 1), lambda i, j: (i, 0))],
            out_specs=pl.BlockSpec((rb, tw), lambda i, j: (i, j)),
        ),
        compiler_params=pltpu.CompilerParams(
            dimension_semantics=("parallel", "parallel"),
            vmem_limit_bytes=budget,
        ),
    )(x2d, s2d)

    return out2d[:NC, :HW].reshape(N, C, H, W)


# --------------------------------------------------------------------------- #
# Reference + self-test
# --------------------------------------------------------------------------- #
def _reference(x, w1, b1, w2, b2):
    pooled = jnp.mean(x, axis=(2, 3))                  # (N, C)
    h = jnp.maximum(pooled @ w1.T + b1, 0.0)           # (N, C//k)
    s = jax.nn.sigmoid(h @ w2.T + b2)                  # (N, C)
    return x * s[:, :, None, None]


def _make_params(key, C, Ck):
    kw1, kb1, kw2, kb2 = jax.random.split(key, 4)
    lim1 = 1.0 / jnp.sqrt(jnp.float32(C))
    w1 = jax.random.uniform(kw1, (Ck, C), jnp.float32, -lim1, lim1)
    b1 = jax.random.uniform(kb1, (Ck,), jnp.float32, -lim1, lim1)
    lim2 = 1.0 / jnp.sqrt(jnp.float32(Ck))
    w2 = jax.random.uniform(kw2, (C, Ck), jnp.float32, -lim2, lim2)
    b2 = jax.random.uniform(kb2, (C,), jnp.float32, -lim2, lim2)
    return w1, b1, w2, b2


if __name__ == "__main__":
    key = jax.random.PRNGKey(0)

    # Module config from the spec: channels=4, k=2, nonlinear='relu'.
    N, C, H, W = 2, 4, 16, 16
    k = 2
    Ck = C // k
    kx, kp = jax.random.split(key)
    x = jax.random.normal(kx, (N, C, H, W), dtype=jnp.float32)
    w1, b1, w2, b2 = _make_params(kp, C, Ck)

    out = jax.block_until_ready(self_attention(x, w1, b1, w2, b2))
    ref = _reference(x, w1, b1, w2, b2)
    assert out.shape == (N, C, H, W)
    assert jnp.allclose(out, ref, atol=1e-5, rtol=1e-5), "mismatch (fused path)"

    # Larger config exercising nb > 1 samples per block on the fused path.
    N2, C2, H2, W2 = 4, 8, 32, 32
    Ck2 = C2 // k
    kx2, kp2 = jax.random.split(kp)
    x2 = jax.random.normal(kx2, (N2, C2, H2, W2), dtype=jnp.float32)
    w1b, b1b, w2b, b2b = _make_params(kp2, C2, Ck2)
    out2 = jax.block_until_ready(self_attention(x2, w1b, b1b, w2b, b2b))
    ref2 = _reference(x2, w1b, b1b, w2b, b2b)
    assert jnp.allclose(out2, ref2, atol=1e-5, rtol=1e-5), "mismatch (fused nb>1)"

    # Forced two-pass fallback with a tiny block budget and a non-(8,128)-
    # aligned slab (HW = 324) to exercise the padding path, the cross-tile
    # pooling accumulation and the per-tile scale broadcast.
    N3, C3, H3, W3 = 4, 6, 18, 18
    Ck3 = C3 // k
    kx3, kp3 = jax.random.split(kp2)
    x3 = jax.random.normal(kx3, (N3, C3, H3, W3), dtype=jnp.float32)
    w1c, b1c, w2c, b2c = _make_params(kp3, C3, Ck3)
    out3 = jax.block_until_ready(
        self_attention(x3, w1c, b1c, w2c, b2c,
                       target_block_bytes=4096, force_two_pass=True))
    ref3 = _reference(x3, w1c, b1c, w2c, b2c)
    assert jnp.allclose(out3, ref3, atol=1e-5, rtol=1e-5), "mismatch (two-pass)"

    print("KERNEL_OK")
</pallas_src>

<mosaic_0001>
module attributes {stable_mosaic.version = 11 : i64} {
  func.func @_fused_kernel(%arg0: i32, %arg1: memref<1x4x256xf32, #tpu.memory_space<vmem>>, %arg2: memref<4x2xf32, #tpu.memory_space<vmem>>, %arg3: memref<1x2xf32, #tpu.memory_space<vmem>>, %arg4: memref<2x4xf32, #tpu.memory_space<vmem>>, %arg5: memref<1x4xf32, #tpu.memory_space<vmem>>, %arg6: memref<1x4x256xf32, #tpu.memory_space<vmem>>) attributes {dimension_semantics = [#tpu.dimension_semantics<parallel>], iteration_bounds = array<i64: 2>, scalar_prefetch = 0 : i64, scratch_operands = 0 : i64, tpu.core_type = #tpu.core_type<tc>, window_params = [{transform_indices = @transform_0, window_bounds = array<i64: 1, 4, 256>}, {pipeline_mode = #tpu.pipeline_mode<synchronous>, transform_indices = @transform_1, window_bounds = array<i64: 4, 2>}, {pipeline_mode = #tpu.pipeline_mode<synchronous>, transform_indices = @transform_2, window_bounds = array<i64: 1, 2>}, {pipeline_mode = #tpu.pipeline_mode<synchronous>, transform_indices = @transform_3, window_bounds = array<i64: 2, 4>}, {pipeline_mode = #tpu.pipeline_mode<synchronous>, transform_indices = @transform_4, window_bounds = array<i64: 1, 4>}, {transform_indices = @transform_5, window_bounds = array<i64: 1, 4, 256>}]} {
    %c0 = arith.constant 0 : index
    %c0_0 = arith.constant 0 : index
    %c0_1 = arith.constant 0 : index
    %0 = vector.load %arg1[%c0, %c0_0, %c0_1] : memref<1x4x256xf32, #tpu.memory_space<vmem>>, vector<1x4x256xf32>
    %cst = arith.constant dense<0.000000e+00> : vector<1x4xf32>
    %1 = vector.multi_reduction <add>, %0, %cst [2] : vector<1x4x256xf32> to vector<1x4xf32>
    %cst_2 = arith.constant 3.906250e-03 : f32
    %2 = vector.broadcast %cst_2 : f32 to vector<1x4xf32>
    %3 = arith.mulf %1, %2 : vector<1x4xf32>
    %c0_3 = arith.constant 0 : index
    %c0_4 = arith.constant 0 : index
    %4 = vector.load %arg2[%c0_3, %c0_4] : memref<4x2xf32, #tpu.memory_space<vmem>>, vector<4x2xf32>
    %cst_5 = arith.constant dense<0.000000e+00> : vector<1x2xf32>
    %5 = tpu.matmul %3, %4, %cst_5 {dimension_numbers = #tpu.dot_dimension_numbers<[1], [0], [0], [1], [0, 0, 1, 1], [], []>} : vector<1x4xf32>, vector<4x2xf32>, vector<1x2xf32> -> vector<1x2xf32>
    %c0_6 = arith.constant 0 : index
    %c0_7 = arith.constant 0 : index
    %6 = vector.load %arg3[%c0_6, %c0_7] : memref<1x2xf32, #tpu.memory_space<vmem>>, vector<1x2xf32>
    %7 = arith.addf %5, %6 : vector<1x2xf32>
    %cst_8 = arith.constant 0.000000e+00 : f32
    %8 = vector.broadcast %cst_8 : f32 to vector<1x2xf32>
    %9 = arith.maximumf %7, %8 : vector<1x2xf32>
    %c0_9 = arith.constant 0 : index
    %c0_10 = arith.constant 0 : index
    %10 = vector.load %arg4[%c0_9, %c0_10] : memref<2x4xf32, #tpu.memory_space<vmem>>, vector<2x4xf32>
    %cst_11 = arith.constant dense<0.000000e+00> : vector<1x4xf32>
    %11 = tpu.matmul %9, %10, %cst_11 {dimension_numbers = #tpu.dot_dimension_numbers<[1], [0], [0], [1], [0, 0, 1, 1], [], []>} : vector<1x2xf32>, vector<2x4xf32>, vector<1x4xf32> -> vector<1x4xf32>
    %c0_12 = arith.constant 0 : index
    %c0_13 = arith.constant 0 : index
    %12 = vector.load %arg5[%c0_12, %c0_13] : memref<1x4xf32, #tpu.memory_space<vmem>>, vector<1x4xf32>
    %13 = arith.addf %11, %12 : vector<1x4xf32>
    %cst_14 = arith.constant 0.000000e+00 : f32
    %14 = vector.broadcast %cst_14 : f32 to vector<1x4xf32>
    %15 = arith.subf %14, %13 : vector<1x4xf32>
    %16 = math.exp %15 : vector<1x4xf32>
    %cst_15 = arith.constant 1.000000e+00 : f32
    %17 = vector.broadcast %cst_15 : f32 to vector<1x4xf32>
    %18 = arith.addf %17, %16 : vector<1x4xf32>
    %cst_16 = arith.constant 1.000000e+00 : f32
    %19 = vector.broadcast %cst_16 : f32 to vector<1x4xf32>
    %20 = arith.divf %19, %18 : vector<1x4xf32>
    %21 = vector.shape_cast %20 : vector<1x4xf32> to vector<1x4x1xf32>
    %22 = vector.broadcast %21 : vector<1x4x1xf32> to vector<1x4x256xf32>
    %23 = arith.mulf %0, %22 : vector<1x4x256xf32>
    %c0_17 = arith.constant 0 : index
    %c0_18 = arith.constant 0 : index
    %c0_19 = arith.constant 0 : index
    %24 = vector.load %arg6[%c0_17, %c0_18, %c0_19] : memref<1x4x256xf32, #tpu.memory_space<vmem>>, vector<1x4x256xf32>
    tpu.vector_store %arg6[%c0_17, %c0_18, %c0_19], %23 {strides = array<i32>} : memref<1x4x256xf32, #tpu.memory_space<vmem>>, vector<1x4x256xf32>,
    return
  }
  func.func @transform_0(%arg0: i32) -> (i32, i32, i32) {
    %c0_i32 = arith.constant 0 : i32
    %c0_i32_0 = arith.constant 0 : i32
    %c0_i32_1 = arith.constant 0 : i32
    return %arg0, %c0_i32, %c0_i32_0 : i32, i32, i32
  }
  func.func @transform_1(%arg0: i32) -> (i32, i32) {
    %c0_i32 = arith.constant 0 : i32
    %c0_i32_0 = arith.constant 0 : i32
    %c0_i32_1 = arith.constant 0 : i32
    return %c0_i32, %c0_i32_0 : i32, i32
  }
  func.func @transform_2(%arg0: i32) -> (i32, i32) {
    %c0_i32 = arith.constant 0 : i32
    %c0_i32_0 = arith.constant 0 : i32
    %c0_i32_1 = arith.constant 0 : i32
    return %c0_i32, %c0_i32_0 : i32, i32
  }
  func.func @transform_3(%arg0: i32) -> (i32, i32) {
    %c0_i32 = arith.constant 0 : i32
    %c0_i32_0 = arith.constant 0 : i32
    %c0_i32_1 = arith.constant 0 : i32
    return %c0_i32, %c0_i32_0 : i32, i32
  }
  func.func @transform_4(%arg0: i32) -> (i32, i32) {
    %c0_i32 = arith.constant 0 : i32
    %c0_i32_0 = arith.constant 0 : i32
    %c0_i32_1 = arith.constant 0 : i32
    return %c0_i32, %c0_i32_0 : i32, i32
  }
  func.func @transform_5(%arg0: i32) -> (i32, i32, i32) {
    %c0_i32 = arith.constant 0 : i32
    %c0_i32_0 = arith.constant 0 : i32
    %c0_i32_1 = arith.constant 0 : i32
    return %arg0, %c0_i32, %c0_i32_0 : i32, i32, i32
  }
}

</mosaic_0001>

<llo_original>
// kernel: self_attention.1
$region0: #{self_attention.1}
  #allocation0 [shape = 'u32[]', space=smem, size = 0x4, offset = 0x4, fixed_abs, tag = 'smem constant byte address 0x4 - core index']
  #allocation1 [shape = 'u32[144,128]{1,0:T(1,128)}', space=vmem, size = 0x12000, scoped, tag = 'internal scratch']
  %s0 = inlined_call_operand.vmem [shape: f32[2,4,256], index: 0, kind: input, shape index: {}]
  %s1 = inlined_call_operand.vmem [shape: f32[4,2], index: 1, kind: input, shape index: {}]
  %s2 = inlined_call_operand.vmem [shape: f32[1,2], index: 2, kind: input, shape index: {}]
  %s3 = inlined_call_operand.vmem [shape: f32[2,4], index: 3, kind: input, shape index: {}]
  %s4 = inlined_call_operand.vmem [shape: f32[1,4], index: 4, kind: input, shape index: {}]
  %s5 = inlined_call_operand.vmem [shape: f32[2,4,256], index: 5, kind: output, shape index: {}]
  %s6 = sld [smem:[#allocation0]]
  $region53: #{self_attention.1} parent=0
    _
  %s8 = ssub.s32 1, %s6
  %s9 = scalar_select 0, %s8, %s6
  loop: start=0, step=1, limit=4
  $region2: #{self_attention.1} parent=0 // loop_pre_header
    _
  $region3: #{self_attention.1} parent=0 // loop_header
    %s11 = sphi 0, %s15
    %p12 = scmp.ge.s32.totalorder %s11, 4
    %s21 = sphi 0, %s23
    %s24 = sphi 0, %s21
    %s25 = sphi 0, %s24
    %s41 = sphi 0, %s25
    %s45 = sphi 0, %s45
    %s47 = sphi 0, %s45
    %s48 = sphi 0, %s47
    %s62 = sphi 0, %s48
    %s66 = sphi 0, %s66
    %s68 = sphi 0, %s66
    %s69 = sphi 0, %s68
    %s83 = sphi 0, %s69
    %s87 = sphi 0, %s87
    %s89 = sphi 0, %s87
    %s90 = sphi 0, %s89
    %s104 = sphi 0, %s90
    %s108 = sphi 0, %s108
    %s110 = sphi 0, %s108
    %s111 = sphi 0, %s110
    %s125 = sphi 0, %s111
    %s131 = sphi 0, %s133
    %s134 = sphi 0, %s131
    %s135 = sphi 0, %s134
    %s151 = sphi 0, %s135
  $region4: #{self_attention.1} parent=0 // loop_header_branch
    %14 = sbr.rel (%p12) target = $region8
  $region5: #{self_attention.1} parent=0 // loop_body
    %s16 = ssub.s32 %s11, 1
    %s17 = ssub.s32 %s11, 2
    %s18 = sadd.s32 %s11, 1
    %s19 = ssub.s32 %s11, %s18
    %p20 = scmp.eq.s32.totalorder %s19, 0
    %s22 = sadd.s32 %s21, 1
    %s23 = scalar_select %p20, %s21, %s22
    %p26 = pneg %p20
    %p27 = scmp.eq.s32.totalorder %s11, 1
    %p28 = por %p26, %p27
    %p29 = scmp.ne.s32.totalorder %s21, %s24
    %p30 = scmp.eq.s32.totalorder %s11, 0
    %p31 = por %p29, %p30
    %p32 = scmp.ne.s32.totalorder %s21, %s24
    %p33 = scmp.eq.s32.totalorder %s16, 1
    %p34 = por %p32, %p33
    %p35 = scmp.ne.s32.totalorder %s24, %s25
    %p36 = scmp.eq.s32.totalorder %s16, 0
    %p37 = por %p35, %p36
    %p38 = scmp.ne.s32.totalorder %s24, %s25
    %p39 = scmp.eq.s32.totalorder %s17, 1
    %p40 = por %p38, %p39
    %p42 = scmp.ne.s32.totalorder %s25, %s41
    %p43 = scmp.eq.s32.totalorder %s17, 0
    %p44 = por %p42, %p43
    %s46 = sadd.s32 %s45, 1
    %p49 = scmp.eq.s32.totalorder %s11, 1
    %p50 = scmp.ne.s32.totalorder %s45, %s47
    %p51 = scmp.eq.s32.totalorder %s11, 0
    %p52 = por %p50, %p51
    %p53 = scmp.ne.s32.totalorder %s45, %s47
    %p54 = scmp.eq.s32.totalorder %s16, 1
    %p55 = por %p53, %p54
    %p56 = scmp.ne.s32.totalorder %s47, %s48
    %p57 = scmp.eq.s32.totalorder %s16, 0
    %p58 = por %p56, %p57
    %p59 = scmp.ne.s32.totalorder %s47, %s48
    %p60 = scmp.eq.s32.totalorder %s17, 1
    %p61 = por %p59, %p60
    %p63 = scmp.ne.s32.totalorder %s48, %s62
    %p64 = scmp.eq.s32.totalorder %s17, 0
    %p65 = por %p63, %p64
    %s67 = sadd.s32 %s66, 1
    %p70 = scmp.eq.s32.totalorder %s11, 1
    %p71 = scmp.ne.s32.totalorder %s66, %s68
    %p72 = scmp.eq.s32.totalorder %s11, 0
    %p73 = por %p71, %p72
    %p74 = scmp.ne.s32.totalorder %s66, %s68
    %p75 = scmp.eq.s32.totalorder %s16, 1
    %p76 = por %p74, %p75
    %p77 = scmp.ne.s32.totalorder %s68, %s69
    %p78 = scmp.eq.s32.totalorder %s16, 0
    %p79 = por %p77, %p78
    %p80 = scmp.ne.s32.totalorder %s68, %s69
    %p81 = scmp.eq.s32.totalorder %s17, 1
    %p82 = por %p80, %p81
    %p84 = scmp.ne.s32.totalorder %s69, %s83
    %p85 = scmp.eq.s32.totalorder %s17, 0
    %p86 = por %p84, %p85
    %s88 = sadd.s32 %s87, 1
    %p91 = scmp.eq.s32.totalorder %s11, 1
    %p92 = scmp.ne.s32.totalorder %s87, %s89
    %p93 = scmp.eq.s32.totalorder %s11, 0
    %p94 = por %p92, %p93
    %p95 = scmp.ne.s32.totalorder %s87, %s89
    %p96 = scmp.eq.s32.totalorder %s16, 1
    %p97 = por %p95, %p96
    %p98 = scmp.ne.s32.totalorder %s89, %s90
    %p99 = scmp.eq.s32.totalorder %s16, 0
    %p100 = por %p98, %p99
    %p101 = scmp.ne.s32.totalorder %s89, %s90
    %p102 = scmp.eq.s32.totalorder %s17, 1
    %p103 = por %p101, %p102
    %p105 = scmp.ne.s32.totalorder %s90, %s104
    %p106 = scmp.eq.s32.totalorder %s17, 0
    %p107 = por %p105, %p106
    %s109 = sadd.s32 %s108, 1
    %p112 = scmp.eq.s32.totalorder %s11, 1
    %p113 = scmp.ne.s32.totalorder %s108, %s110
    %p114 = scmp.eq.s32.totalorder %s11, 0
    %p115 = por %p113, %p114
    %p116 = scmp.ne.s32.totalorder %s108, %s110
    %p117 = scmp.eq.s32.totalorder %s16, 1
    %p118 = por %p116, %p117
    %p119 = scmp.ne.s32.totalorder %s110, %s111
    %p120 = scmp.eq.s32.totalorder %s16, 0
    %p121 = por %p119, %p120
    %p122 = scmp.ne.s32.totalorder %s110, %s111
    %p123 = scmp.eq.s32.totalorder %s17, 1
    %p124 = por %p122, %p123
    %p126 = scmp.ne.s32.totalorder %s111, %s125
    %p127 = scmp.eq.s32.totalorder %s17, 0
    %p128 = por %p126, %p127
    %s129 = ssub.s32 %s11, %s18
    %p130 = scmp.eq.s32.totalorder %s129, 0
    %s132 = sadd.s32 %s131, 1
    %s133 = scalar_select %p130, %s131, %s132
    %p136 = pneg %p130
    %p137 = scmp.eq.s32.totalorder %s11, 1
    %p138 = por %p136, %p137
    %p139 = scmp.ne.s32.totalorder %s131, %s134
    %p140 = scmp.eq.s32.totalorder %s11, 0
    %p141 = por %p139, %p140
    %p142 = scmp.ne.s32.totalorder %s131, %s134
    %p143 = scmp.eq.s32.totalorder %s16, 1
    %p144 = por %p142, %p143
    %p145 = scmp.ne.s32.totalorder %s134, %s135
    %p146 = scmp.eq.s32.totalorder %s16, 0
    %p147 = por %p145, %p146
    %p148 = scmp.ne.s32.totalorder %s134, %s135
    %p149 = scmp.eq.s32.totalorder %s17, 1
    %p150 = por %p148, %p149
    %p152 = scmp.ne.s32.totalorder %s135, %s151
    %p153 = scmp.eq.s32.totalorder %s17, 0
    %p154 = por %p152, %p153
    %p155 = scmp.le.s32.totalorder 1, %s11
    %p156 = scmp.lt.s32.totalorder %s11, 3
    %p157 = pnand %p155, %p156
    %p158 = pneg %p157
    // Predicated region
    $region9: #{self_attention.1} parent=5 // pred_check
      _
    $region10: #{self_attention.1} parent=5 // pred_check_branch
      %160 = sbr.rel (%p157) target = $region12
    $region11: #{self_attention.1} parent=5 // pred_region
      %s161 = ssub.s32 %s11, 1
      // Predicated region
      $region13: #{self_attention.1} parent=11 // pred_check
        %p162 = pneg %p58
      $region14: #{self_attention.1} parent=11 // pred_check_branch
        %164 = sbr.rel (%p162) target = $region16
      $region15: #{self_attention.1} parent=11 // pred_region
        _
      $region16: #{self_attention.1} parent=11 // pred_fallthru
        _
      // Predicated region
      $region17: #{self_attention.1} parent=11 // pred_check
        %p165 = pneg %p79
      $region18: #{self_attention.1} parent=11 // pred_check_branch
        %167 = sbr.rel (%p165) target = $region20
      $region19: #{self_attention.1} parent=11 // pred_region
        _
      $region20: #{self_attention.1} parent=11 // pred_fallthru
        _
      // Predicated region
      $region21: #{self_attention.1} parent=11 // pred_check
        %p168 = pneg %p100
      $region22: #{self_attention.1} parent=11 // pred_check_branch
        %170 = sbr.rel (%p168) target = $region24
      $region23: #{self_attention.1} parent=11 // pred_region
        _
      $region24: #{self_attention.1} parent=11 // pred_fallthru
        _
      // Predicated region
      $region25: #{self_attention.1} parent=11 // pred_check
        %p171 = pneg %p121
      $region26: #{self_attention.1} parent=11 // pred_check_branch
        %173 = sbr.rel (%p171) target = $region28
      $region27: #{self_attention.1} parent=11 // pred_region
        _
      $region28: #{self_attention.1} parent=11 // pred_fallthru
        _
    $region12: #{self_attention.1} parent=5 // pred_fallthru
      _
    %p174 = scmp.lt.s32.totalorder %s11, 2
    // Predicated region
    $region29: #{self_attention.1} parent=5 // pred_check
      %p175 = pneg %p174
    $region30: #{self_attention.1} parent=5 // pred_check_branch
      %177 = sbr.rel (%p175) target = $region32
    $region31: #{self_attention.1} parent=5 // pred_region
      // Predicated region
      $region33: #{self_attention.1} parent=31 // pred_check
        %p178 = pneg %p31
      $region34: #{self_attention.1} parent=31 // pred_check_branch
        %180 = sbr.rel (%p178) target = $region36
      $region35: #{self_attention.1} parent=31 // pred_region
        %p181 = scmp.lt.s32.totalorder %s11, 1
        %s182 = scalar_select %p181, %s11, 1
        %s183 = smul.addr %s182, 2
        %s184 = smul.addr %s183, 4
        %s185 = scalar_lea.vmem %s0, %s184
      $region36: #{self_attention.1} parent=31 // pred_fallthru
        _
    $region32: #{self_attention.1} parent=5 // pred_fallthru
      _
    %p186 = scmp.le.s32.totalorder 1, %s11
    %p187 = scmp.lt.s32.totalorder %s11, 3
    %p188 = pnand %p186, %p187
    %p189 = pneg %p188
    // Predicated region
    $region37: #{self_attention.1} parent=5 // pred_check
      _
    $region38: #{self_attention.1} parent=5 // pred_check_branch
      %191 = sbr.rel (%p188) target = $region40
    $region39: #{self_attention.1} parent=5 // pred_region
      %s192 = ssub.s32 %s11, 1
      %p193 = scmp.lt.s32.totalorder %s16, 1
      %s194 = scalar_select %p193, %s16, 1
      %s195 = smul.addr %s194, 2
      %s196 = smul.addr %s195, 4
      %s197 = scalar_lea.vmem %s0, %s196
      %p198 = pneg %p37
      %p199 = pneg %p34
      %p200 = pneg %p58
      %p201 = pneg %p55
      %p202 = pneg %p79
      %p203 = pneg %p76
      %p204 = pneg %p100
      %p205 = pneg %p97
      %p206 = pneg %p121
      %p207 = pneg %p118
      %p208 = pneg %p147
      %p209 = pneg %p144
      %p210 = scmp.lt.s32.totalorder %s16, 1
      %s211 = scalar_select %p210, %s16, 1
      %s212 = smul.addr %s211, 2
      %s213 = smul.addr %s212, 4
      %s214 = scalar_lea.vmem %s5, %s213
      %p215 = scmp.lt.s32.totalorder %s16, 1
      %s216 = scalar_select %p215, %s16, 1
      %s217 = smul.addr %s216, 2
      %s218 = smul.addr %s217, 4
      %s219 = scalar_lea.vmem %s0, %s218
      %p220 = scmp.lt.s32.totalorder %s16, 1
      %s221 = scalar_select %p220, %s16, 1
      %s222 = smul.addr %s221, 2
      %s223 = smul.addr %s222, 4
      %s224 = scalar_lea.vmem %s5, %s223
      %v225 = vld [vmem:[%s219] sm:$0xff]
      %v227 = vcombine.high %v225, %v225
      %vm229 = vcmask 1043456
      %v230 = vsel %vm229, %v225, 0.0
      %v231 = vsel %vm229, %v227, 0.0
      %v232 = vadd.f32 %v230, %v231
      %233 = vadd.xlane.f32.xlu0 %v232
      %v234 = vpop.xlane.xlu0 %233
      %v235 = vmul.f32 %v234, 0.00390625
      %v236 = vld [vmem:[%s1] sm:$0xf]
      %v237 = vld [vmem:[%s2] sm:$0x1]
      %v239 = vlaneseq
      %v240 = vand.u32 %v239, 127
      %v241 = vlaneseq
      %v242 = vshrl.u32 %v241, 7
      %v243 = vsub.s32 %v240, %v242
      %v244 = vrot.slane %v235, %v243
      %vm245 = vcmask 31744
      %v246 = vsel %vm245, %v244, 0
      %v249 = vsel %vm229, %v236, 0
      %251 = vmatprep.subr.mxu0 0.0
      %252 = vmatpush1.msra.mxu0 %v249
      %253 = vmatprep.subr.mxu0 0.0
      %254 = vmatpush1.msra.mxu0 0.0
      %255 = vmatprep.subr.mxu0 0.0
      %256 = vmatpush1.msra.mxu0 0.0
      %257 = vmatprep.subr.mxu0 0.0
      %258 = vmatpush1.msra.mxu0 0.0
      %259 = vmatprep.subr.mxu0 0.0
      %260 = vmatpush1.msra.mxu0 0.0
      %261 = vmatprep.subr.mxu0 0.0
      %262 = vmatpush1.msra.mxu0 0.0
      %263 = vmatprep.subr.mxu0 0.0
      %264 = vmatpush1.msra.mxu0 0.0
      %265 = vmatprep.subr.mxu0 0.0
      %266 = vmatpush1.msra.mxu0 0.0
      %267 = vmatprep.subr.mxu0 0.0
      %268 = vmatpush1.msra.mxu0 0.0
      %269 = vmatprep.subr.mxu0 0.0
      %270 = vmatpush1.msra.mxu0 0.0
      %271 = vmatprep.subr.mxu0 0.0
      %272 = vmatpush1.msra.mxu0 0.0
      %273 = vmatprep.subr.mxu0 0.0
      %274 = vmatpush1.msra.mxu0 0.0
      %275 = vmatprep.subr.mxu0 0.0
      %276 = vmatpush1.msra.mxu0 0.0
      %277 = vmatprep.subr.mxu0 0.0
      %278 = vmatpush1.msra.mxu0 0.0
      %279 = vmatprep.subr.mxu0 0.0
      %280 = vmatpush1.msra.mxu0 0.0
      %281 = vmatprep.subr.mxu0 0.0
      %282 = vmatpush1.msra.mxu0 0.0
      %283 = vmatprep.subr.mxu0 0.0
      %284 = vmatpush1.msra.mxu0 0.0
      %285 = vmatprep.subr.mxu0 0.0
      %286 = vmatpush1.msra.mxu0 0.0
      %287 = vmatprep.subr.mxu0 0.0
      %288 = vmatpush1.msra.mxu0 0.0
      %289 = vmatprep.subr.mxu0 0.0
      %290 = vmatpush1.msra.mxu0 0.0
      %291 = vmatprep.subr.mxu0 0.0
      %292 = vmatpush1.msra.mxu0 0.0
      %293 = vmatprep.subr.mxu0 0.0
      %294 = vmatpush1.msra.mxu0 0.0
      %295 = vmatprep.subr.mxu0 0.0
      %296 = vmatpush1.msra.mxu0 0.0
      %297 = vmatprep.subr.mxu0 0.0
      %298 = vmatpush1.msra.mxu0 0.0
      %299 = vmatprep.subr.mxu0 0.0
      %300 = vmatpush1.msra.mxu0 0.0
      %301 = vmatprep.subr.mxu0 0.0
      %302 = vmatpush1.msra.mxu0 0.0
      %303 = vmatprep.subr.mxu0 0.0
      %304 = vmatpush1.msra.mxu0 0.0
      %305 = vmatprep.subr.mxu0 0.0
      %306 = vmatpush1.msra.mxu0 0.0
      %307 = vmatprep.subr.mxu0 0.0
      %308 = vmatpush1.msra.mxu0 0.0
      %309 = vmatprep.subr.mxu0 0.0
      %310 = vmatpush1.msra.mxu0 0.0
      %311 = vmatprep.subr.mxu0 0.0
      %312 = vmatpush1.msra.mxu0 0.0
      %313 = vmatprep.subr.mxu0 0.0
      %314 = vmatpush1.msra.mxu0 0.0
      %315 = vmatprep.mubr.f32.mxu0 0.0
      %316 = vmatmul.mubr.f32.gmra.mrb[0].mxu0 %v246
      %v317 = vpop.f32.mrb[0].mxu0
      %v318 = vadd.f32 %v237, %v317
      %v319 = vpop.f32.mrb[0].mxu0
      %320 = vdwg.mxu0
      %v321 = vmax.f32 %v318, 0.0
      %v322 = vld [vmem:[%s3] sm:$0x3]
      %v323 = vld [vmem:[%s4] sm:$0x1]
      %vm324 = vcmask 15360
      %v326 = vsel %vm324, %v321, 0
      %vm328 = vcmask 1041408
      %v330 = vsel %vm328, %v322, 0
      %332 = vmatprep.subr.mxu0 0.0
      %333 = vmatpush1.msra.mxu0 %v330
      %334 = vmatprep.subr.mxu0 0.0
      %335 = vmatpush1.msra.mxu0 0.0
      %336 = vmatprep.subr.mxu0 0.0
      %337 = vmatpush1.msra.mxu0 0.0
      %338 = vmatprep.subr.mxu0 0.0
      %339 = vmatpush1.msra.mxu0 0.0
      %340 = vmatprep.subr.mxu0 0.0
      %341 = vmatpush1.msra.mxu0 0.0
      %342 = vmatprep.subr.mxu0 0.0
      %343 = vmatpush1.msra.mxu0 0.0
      %344 = vmatprep.subr.mxu0 0.0
      %345 = vmatpush1.msra.mxu0 0.0
      %346 = vmatprep.subr.mxu0 0.0
      %347 = vmatpush1.msra.mxu0 0.0
      %348 = vmatprep.subr.mxu0 0.0
      %349 = vmatpush1.msra.mxu0 0.0
      %350 = vmatprep.subr.mxu0 0.0
      %351 = vmatpush1.msra.mxu0 0.0
      %352 = vmatprep.subr.mxu0 0.0
      %353 = vmatpush1.msra.mxu0 0.0
      %354 = vmatprep.subr.mxu0 0.0
      %355 = vmatpush1.msra.mxu0 0.0
      %356 = vmatprep.subr.mxu0 0.0
      %357 = vmatpush1.msra.mxu0 0.0
      %358 = vmatprep.subr.mxu0 0.0
      %359 = vmatpush1.msra.mxu0 0.0
      %360 = vmatprep.subr.mxu0 0.0
      %361 = vmatpush1.msra.mxu0 0.0
      %362 = vmatprep.subr.mxu0 0.0
      %363 = vmatpush1.msra.mxu0 0.0
      %364 = vmatprep.subr.mxu0 0.0
      %365 = vmatpush1.msra.mxu0 0.0
      %366 = vmatprep.subr.mxu0 0.0
      %367 = vmatpush1.msra.mxu0 0.0
      %368 = vmatprep.subr.mxu0 0.0
      %369 = vmatpush1.msra.mxu0 0.0
      %370 = vmatprep.subr.mxu0 0.0
      %371 = vmatpush1.msra.mxu0 0.0
      %372 = vmatprep.subr.mxu0 0.0
      %373 = vmatpush1.msra.mxu0 0.0
      %374 = vmatprep.subr.mxu0 0.0
      %375 = vmatpush1.msra.mxu0 0.0
      %376 = vmatprep.subr.mxu0 0.0
      %377 = vmatpush1.msra.mxu0 0.0
      %378 = vmatprep.subr.mxu0 0.0
      %379 = vmatpush1.msra.mxu0 0.0
      %380 = vmatprep.subr.mxu0 0.0
      %381 = vmatpush1.msra.mxu0 0.0
      %382 = vmatprep.subr.mxu0 0.0
      %383 = vmatpush1.msra.mxu0 0.0
      %384 = vmatprep.subr.mxu0 0.0
      %385 = vmatpush1.msra.mxu0 0.0
      %386 = vmatprep.subr.mxu0 0.0
      %387 = vmatpush1.msra.mxu0 0.0
      %388 = vmatprep.subr.mxu0 0.0
      %389 = vmatpush1.msra.mxu0 0.0
      %390 = vmatprep.subr.mxu0 0.0
      %391 = vmatpush1.msra.mxu0 0.0
      %392 = vmatprep.subr.mxu0 0.0
      %393 = vmatpush1.msra.mxu0 0.0
      %394 = vmatprep.subr.mxu0 0.0
      %395 = vmatpush1.msra.mxu0 0.0
      %396 = vmatprep.mubr.f32.mxu0 0.0
      %397 = vmatmul.mubr.f32.gmra.mrb[0].mxu0 %v326
      %v398 = vpop.f32.mrb[0].mxu0
      %v399 = vadd.f32 %v323, %v398
      %v400 = vpop.f32.mrb[0].mxu0
      %401 = vdwg.mxu0
      %v402 = vsub.f32 0.0, %v399
      %v403 = vmul.f32 %v402, 1.442695
      %v404 = vpow.pop %v403
      %v405 = vadd.f32 %v404, 1.0
      %v406 = vrcp.pop %v405
      %v407 = vmul.f32 1.0, %v406
      %v408 = vlaneseq
      %v409 = vshrl.u32 %v408, 7
      %v410 = vsub.s32 0, %v409
      %v411 = vrot.slane %v407, %v410
      %413 = vbcast.lane.b32.xlu0 %v411, 256
      %v414 = vpop.permute.xlu0 %413
      %v417 = vunpack.c.l.s4 839922192
      %v418 = vunpack.c.0.s8 %v417
      %v419 = vlaneseq
      %v420 = vshrl.u32 %v419, 7
      %v421 = vsub.s32 %v418, %v420
      %v422 = vrot.slane %v414, %v421
      %v424 = vmul.f32 %v225, %v422
      %425 = vst [vmem:[%s224] sm:$0xff] %v424
      %p426 = scmp.lt.s32.totalorder %s16, 1
      %s427 = scalar_select %p426, %s16, 1
      %s428 = smul.addr %s427, 2
      %s429 = smul.addr %s428, 4
      %s430 = scalar_lea.vmem %s5, %s429
      // Predicated region
      $region41: #{self_attention.1} parent=39 // pred_check
        %p431 = pneg %p144
      $region42: #{self_attention.1} parent=39 // pred_check_branch
        %433 = sbr.rel (%p431) target = $region44
      $region43: #{self_attention.1} parent=39 // pred_region
        _
      $region44: #{self_attention.1} parent=39 // pred_fallthru
        _
    $region40: #{self_attention.1} parent=5 // pred_fallthru
      _
    %p434 = scmp.le.s32.totalorder 2, %s11
    // Predicated region
    $region45: #{self_attention.1} parent=5 // pred_check
      %p435 = pneg %p434
    $region46: #{self_attention.1} parent=5 // pred_check_branch
      %437 = sbr.rel (%p435) target = $region48
    $region47: #{self_attention.1} parent=5 // pred_region
      %s438 = ssub.s32 %s11, 2
      // Predicated region
      $region49: #{self_attention.1} parent=47 // pred_check
        %p439 = pneg %p150
      $region50: #{self_attention.1} parent=47 // pred_check_branch
        %441 = sbr.rel (%p439) target = $region52
      $region51: #{self_attention.1} parent=47 // pred_region
        %p442 = scmp.lt.s32.totalorder %s17, 1
        %s443 = scalar_select %p442, %s17, 1
        %s444 = smul.addr %s443, 2
        %s445 = smul.addr %s444, 4
        %s446 = scalar_lea.vmem %s5, %s445
      $region52: #{self_attention.1} parent=47 // pred_fallthru
        _
    $region48: #{self_attention.1} parent=5 // pred_fallthru
      _
  $region6: #{self_attention.1} parent=0 // loop_footer
    %s15 = sadd.s32 1, %s11
  $region7: #{self_attention.1} parent=0 // loop_footer_branch
    %10 = sbr.rel target = $region3
  $region8: #{self_attention.1} parent=0 // loop_exit
    _

</llo_original>
